<compile_context>
chip_gen: v7x
topology: tpu7x:2x2x1
jax: 0.10.0
libtpu: 0.0.40
codegen_flags: <defaults>
</compile_context>

<pallas_src>
import jax
import jax.numpy as jnp
from jax import lax
from jax.experimental import pallas as pl
from jax.experimental.pallas import tpu as pltpu


def _round_up(x, m):
    return ((x + m - 1) // m) * m


def _cdiv(a, b):
    return -(-a // b)


def _fc_kernel(feats_ref, w_ref, b_ref, out_ref):
    # feats_ref: (tile_n, in_size)   -- streamed per grid step (double-buffered)
    # w_ref:     (out_size, in_size) -- resident (constant block index)
    # b_ref:     (out_size, 1)       -- f32, lane-broadcast
    # out_ref:   (out_size, tile_n)  -- N on the lane axis -> lane-dense stores
    #
    # A @ B^T style contraction (both operands contract their last dim); the
    # MXU consumes the transposed RHS directly, so the big feats tile never
    # goes through an XLU transpose.
    acc = lax.dot_general(
        w_ref[...],
        feats_ref[...],
        dimension_numbers=(((1,), (1,)), ((), ())),  # contract feature axes
        preferred_element_type=jnp.float32,
    )  # (out_size, tile_n), f32 accumulation
    out_ref[...] = (acc + b_ref[...]).astype(out_ref.dtype)


def _vmem_budgets():
    """Return (vmem_limit_bytes, per-tile feats byte budget) per generation."""
    cap = None
    try:
        info = pltpu.get_tpu_info()
        for attr in ("vmem_capacity_bytes", "vmem_bytes", "vmem_size_bytes"):
            v = getattr(info, attr, None)
            if v:
                cap = int(v)
                break
    except Exception:
        cap = None
    if cap is None:
        cap = 64 * 1024 * 1024  # conservative: assume v7x-sized VMEM
    if cap >= 100 * 1024 * 1024:
        # v5e / v6e: 128 MiB physical VMEM -> big tiles, generous limit.
        return 96 * 1024 * 1024, 32 * 1024 * 1024
    # v7x: 64 MiB physical -> keep double-buffered feats <= ~32 MiB under 48 MiB.
    return 48 * 1024 * 1024, 16 * 1024 * 1024


def _pick_tile_n(n, in_size, itemsize, per_tile_budget):
    row_bytes = max(1, in_size * itemsize)
    # Target ~8 MiB of feats per tile (multi-MiB tiles reach ~85% of the HBM
    # roofline; small tiles pay the ~0.35 us per-grid-step fixed cost).
    tile_n = _round_up(max(1, (8 * 1024 * 1024) // row_bytes), 128)
    tile_n = max(512, min(tile_n, 4096))
    # Hard VMEM cap so 2x (double-buffered) tile fits the generation's budget.
    max_rows = max(128, (per_tile_budget // row_bytes) // 128 * 128)
    tile_n = min(tile_n, max_rows)

    if tile_n >= n:
        # One tile would cover all rows: no DMA/compute overlap and one idle
        # TensorCore on v7x.  Split when there is enough work.
        if n >= 4 * 512:
            tile_n = _round_up(_cdiv(n, 4), 128)   # ~4 steps
        elif n >= 2 * 128:
            tile_n = _round_up(_cdiv(n, 2), 128)   # >=2 steps (v7x megacore)
        else:
            tile_n = n                             # tiny problem: single full block
    return tile_n


def fc_layer_forward(feats, weight, bias, *, tile_n=None):
    """Pallas implementation of FCLayer.forward.

    feats:  (N, in_size)
    weight: (out_size, in_size)   -- PyTorch nn.Linear convention
    bias:   (out_size,)
    returns (feats, x) with x of shape (N, out_size)
    """
    n, in_size = feats.shape
    out_size, in_size_w = weight.shape
    assert in_size_w == in_size, "weight/feats feature-dim mismatch"

    out_dtype = feats.dtype
    itemsize = int(jnp.dtype(feats.dtype).itemsize)

    # Tiny operands: match weight dtype to feats (free), bias kept in f32.
    w_in = weight.astype(feats.dtype)
    b_col = bias.astype(jnp.float32).reshape(out_size, 1)

    vmem_limit, per_tile_budget = _vmem_budgets()

    if tile_n is None:
        tile_n = _pick_tile_n(n, in_size, itemsize, per_tile_budget)
    else:
        # Caller override: full block if it covers N, else keep lane-dense
        # (multiple of 128) tiles.
        tile_n = n if tile_n >= n else _round_up(tile_n, 128)

    grid = (_cdiv(n, tile_n),)

    cost = pl.CostEstimate(
        flops=2 * n * in_size * out_size,
        transcendentals=0,
        bytes_accessed=(
            n * in_size * itemsize          # feats read
            + out_size * in_size * itemsize  # weight read
            + out_size * 4                   # bias read
            + out_size * n * itemsize        # output write
        ),
    )

    x_t = pl.pallas_call(
        _fc_kernel,
        out_shape=jax.ShapeDtypeStruct((out_size, n), out_dtype),
        grid_spec=pltpu.PrefetchScalarGridSpec(
            num_scalar_prefetch=0,
            grid=grid,
            in_specs=[
                pl.BlockSpec((tile_n, in_size), lambda i: (i, 0)),
                pl.BlockSpec((out_size, in_size), lambda i: (0, 0)),
                pl.BlockSpec((out_size, 1), lambda i: (0, 0)),
            ],
            out_specs=pl.BlockSpec((out_size, tile_n), lambda i: (0, i)),
        ),
        compiler_params=pltpu.CompilerParams(
            dimension_semantics=("parallel",),   # megacore-shard N on v7x
            vmem_limit_bytes=vmem_limit,
        ),
        cost_estimate=cost,
    )(feats, w_in, b_col)

    # Back to PyTorch layout (N, out_size); for out_size == 1 this transpose is
    # a free reshape (no data movement), otherwise it moves only N*out_size
    # elements (negligible vs. feats traffic).
    x = x_t.T
    return feats, x


if __name__ == "__main__":
    # Small shapes consistent with the module: N instances, in_size features,
    # out_size = 1 (the FCLayer default).
    N, IN_SIZE, OUT_SIZE = 8, 32, 1

    key = jax.random.PRNGKey(0)
    k_feats, k_w, k_b = jax.random.split(key, 3)

    feats = jax.random.normal(k_feats, (N, IN_SIZE), dtype=jnp.float32)
    bound = 1.0 / (IN_SIZE ** 0.5)
    weight = jax.random.uniform(k_w, (OUT_SIZE, IN_SIZE), jnp.float32, -bound, bound)
    bias = jax.random.uniform(k_b, (OUT_SIZE,), jnp.float32, -bound, bound)

    feats_out, x = fc_layer_forward(feats, weight, bias)
    jax.block_until_ready((feats_out, x))

    x_ref = feats @ weight.T + bias
    assert feats_out.shape == (N, IN_SIZE)
    assert x.shape == (N, OUT_SIZE)
    assert jnp.allclose(x, x_ref, atol=1e-5, rtol=1e-5)
    assert jnp.array_equal(feats_out, feats)

    # Second run: non-tile-aligned N (Pallas partial final block, no wrapper
    # pad), multi-step grid, out_size > 1, all in native f32 streaming.
    N2, IN2, OUT2 = 1000, 128, 4
    feats2 = jax.random.normal(k_feats, (N2, IN2), dtype=jnp.float32)
    w2 = jax.random.uniform(k_w, (OUT2, IN2), jnp.float32, -0.1, 0.1)
    b2 = jax.random.uniform(k_b, (OUT2,), jnp.float32, -0.1, 0.1)

    _, x2 = fc_layer_forward(feats2, w2, b2)
    jax.block_until_ready(x2)

    x2_ref = feats2 @ w2.T + b2
    assert x2.shape == (N2, OUT2)
    assert jnp.allclose(x2, x2_ref, atol=1e-4, rtol=1e-4)

    print("KERNEL_OK")
</pallas_src>

<mosaic_0001>
module attributes {stable_mosaic.version = 11 : i64} {
  func.func @_fc_kernel(%arg0: i32, %arg1: memref<8x32xf32, #tpu.memory_space<vmem>>, %arg2: memref<1x32xf32, #tpu.memory_space<vmem>>, %arg3: memref<1x1xf32, #tpu.memory_space<vmem>>, %arg4: memref<1x8xf32, #tpu.memory_space<vmem>>) attributes {dimension_semantics = [#tpu.dimension_semantics<parallel>], iteration_bounds = array<i64: 1>, scalar_prefetch = 0 : i64, scratch_operands = 0 : i64, tpu.core_type = #tpu.core_type<tc>, window_params = [{transform_indices = @transform_0, window_bounds = array<i64: 8, 32>}, {pipeline_mode = #tpu.pipeline_mode<synchronous>, transform_indices = @transform_1, window_bounds = array<i64: 1, 32>}, {pipeline_mode = #tpu.pipeline_mode<synchronous>, transform_indices = @transform_2, window_bounds = array<i64: 1, 1>}, {transform_indices = @transform_3, window_bounds = array<i64: 1, 8>}]} {
    %c0 = arith.constant 0 : index
    %c0_0 = arith.constant 0 : index
    %0 = vector.load %arg2[%c0, %c0_0] : memref<1x32xf32, #tpu.memory_space<vmem>>, vector<1x32xf32>
    %c0_1 = arith.constant 0 : index
    %c0_2 = arith.constant 0 : index
    %1 = vector.load %arg1[%c0_1, %c0_2] : memref<8x32xf32, #tpu.memory_space<vmem>>, vector<8x32xf32>
    %cst = arith.constant dense<0.000000e+00> : vector<1x8xf32>
    %2 = tpu.matmul %0, %1, %cst {dimension_numbers = #tpu.dot_dimension_numbers<[1], [1], [0], [0], [0, 0, 1, 0], [], []>} : vector<1x32xf32>, vector<8x32xf32>, vector<1x8xf32> -> vector<1x8xf32>
    %c0_3 = arith.constant 0 : index
    %c0_4 = arith.constant 0 : index
    %3 = vector.load %arg3[%c0_3, %c0_4] : memref<1x1xf32, #tpu.memory_space<vmem>>, vector<1x1xf32>
    %4 = vector.broadcast %3 : vector<1x1xf32> to vector<1x8xf32>
    %5 = arith.addf %2, %4 : vector<1x8xf32>
    %c0_5 = arith.constant 0 : index
    %c0_6 = arith.constant 0 : index
    %6 = vector.load %arg4[%c0_5, %c0_6] : memref<1x8xf32, #tpu.memory_space<vmem>>, vector<1x8xf32>
    tpu.vector_store %arg4[%c0_5, %c0_6], %5 {strides = array<i32>} : memref<1x8xf32, #tpu.memory_space<vmem>>, vector<1x8xf32>,
    return
  }
  func.func @transform_0(%arg0: i32) -> (i32, i32) {
    %c0_i32 = arith.constant 0 : i32
    %c0_i32_0 = arith.constant 0 : i32
    return %arg0, %c0_i32 : i32, i32
  }
  func.func @transform_1(%arg0: i32) -> (i32, i32) {
    %c0_i32 = arith.constant 0 : i32
    %c0_i32_0 = arith.constant 0 : i32
    %c0_i32_1 = arith.constant 0 : i32
    return %c0_i32, %c0_i32_0 : i32, i32
  }
  func.func @transform_2(%arg0: i32) -> (i32, i32) {
    %c0_i32 = arith.constant 0 : i32
    %c0_i32_0 = arith.constant 0 : i32
    %c0_i32_1 = arith.constant 0 : i32
    return %c0_i32, %c0_i32_0 : i32, i32
  }
  func.func @transform_3(%arg0: i32) -> (i32, i32) {
    %c0_i32 = arith.constant 0 : i32
    %c0_i32_0 = arith.constant 0 : i32
    return %c0_i32, %arg0 : i32, i32
  }
}

</mosaic_0001>

<llo_original>
// kernel: tpu_custom_call.1
$region0: #{tpu_custom_call.1}
  #allocation0 [shape = 'u32[]', space=smem, size = 0x4, offset = 0x4, fixed_abs, tag = 'smem constant byte address 0x4 - core index']
  #allocation1 [shape = 'u32[144,128]{1,0:T(1,128)}', space=vmem, size = 0x12000, scoped, tag = 'internal scratch']
  #allocation2 [shape = 'f32[1,1]{1,0:T(1,128)S(1)}', space=vmem, size = 0x200, scoped, tag = 'scoped memory for tpu_custom_call.1']
  %s0 = inlined_call_operand.hbm [shape: f32[8,32], index: 0, kind: input, shape index: {}]
  %s1 = inlined_call_operand.vmem [shape: f32[1,32], index: 1, kind: input, shape index: {}]
  %s2 = inlined_call_operand.<no memory space> [shape: f32[1,1], index: 2, kind: input, shape index: {}]
  %s3 = inlined_call_operand.hbm [shape: f32[1,8], index: 3, kind: output, shape index: {}]
  %s4 = sld [smem:[#allocation0]]
  $region26: #{tpu_custom_call.1} parent=0
    _
  %s6 = ssub.s32 1, %s4
  %s7 = scalar_select 0, %s6, %s4
  %v8 = vstv %s2
  %9 = vst [vmem:[#allocation2] sm:$0x1] %v8
  $region1: #{tpu_custom_call.1} parent=0
    #allocation3 [shape = 'u8[4096]{0}', space=vmem, size = 0x1000, scoped, tag = 'input window, operand 0, single buffered']
    #allocation4 [shape = 's32[1]{0}', space=sflag, size = 0x4, scoped, tag = 'scoped memory for tpu_custom_call.1']
    #allocation5 [shape = 's32[1]{0}', space=sflag, size = 0x4, scoped, tag = 'scoped memory for tpu_custom_call.1']
    #allocation6 [shape = 'u8[512]{0}', space=vmem, size = 0x400, scoped, tag = 'output window, operand 0, single buffered']
    %10 = vsyncpa [#allocation4], 0
    %11 = vsyncpa [#allocation5], 0
    // Predicated region
    $region2: #{tpu_custom_call.1} parent=1 // pred_check
      _
    $region3: #{tpu_custom_call.1} parent=1 // pred_check_branch
      %13 = sbr.rel (0) target = $region5
    $region4: #{tpu_custom_call.1} parent=1 // pred_region
      %s15 = ssub.s32 128, 128
      %16 = vsyncadd [#allocation4], %s15
      %s18 = sshll.u32 [#allocation3], 4
      %s19 = int_to_ptr.vmem [resolvable:$true] %s18
      %21 = dma.hbm_to_vmem [thread:$0]  %s0, 128, %s19, [#allocation4]
    $region5: #{tpu_custom_call.1} parent=1 // pred_fallthru
      _
    // Predicated region
    $region6: #{tpu_custom_call.1} parent=1 // pred_check
      _
    $region7: #{tpu_custom_call.1} parent=1 // pred_check_branch
      %23 = sbr.rel (0) target = $region9
    $region8: #{tpu_custom_call.1} parent=1 // pred_region
      _
    $region9: #{tpu_custom_call.1} parent=1 // pred_fallthru
      _
    // Predicated region
    $region10: #{tpu_custom_call.1} parent=1 // pred_check
      _
    $region11: #{tpu_custom_call.1} parent=1 // pred_check_branch
      %25 = sbr.rel (0) target = $region13
    $region12: #{tpu_custom_call.1} parent=1 // pred_region
      _
    $region13: #{tpu_custom_call.1} parent=1 // pred_fallthru
      _
    // Predicated region
    $region14: #{tpu_custom_call.1} parent=1 // pred_check
      _
    $region15: #{tpu_custom_call.1} parent=1 // pred_check_branch
      %27 = sbr.rel (0) target = $region17
    $region16: #{tpu_custom_call.1} parent=1 // pred_region
      %28 = dma.done [#allocation4], 128
    $region17: #{tpu_custom_call.1} parent=1 // pred_fallthru
      _
    %v29 = vld [vmem:[%s1] sm:$0x1]
    %v30 = vld [vmem:[#allocation3] sm:$0xff]
    %v31 = vld [vmem:[#allocation2] sm:$0x1]
    %33 = vset.pattern.permute.xlu0 0
    %34 = vperm.xlu0 %33, %v31
    %v35 = vpop.permute.xlu0 %34
    %v37 = vlaneseq
    %v38 = vshrl.u32 %v37, 7
    %v39 = vsub.s32 0, %v38
    %v40 = vrot.slane %v35, %v39
    %vm41 = vcmask 261120
    %v43 = vsel %vm41, %v29, 0
    %v46 = vsel %vm41, %v30, 0
    %48 = vmatprep.subr.mxu0 0.0
    %49 = vmatpush1.xpose.msra.mxu0 %v46
    %50 = vmatprep.subr.mxu0 0.0
    %51 = vmatpush1.xpose.msra.mxu0 0.0
    %52 = vmatprep.subr.mxu0 0.0
    %53 = vmatpush1.xpose.msra.mxu0 0.0
    %54 = vmatprep.subr.mxu0 0.0
    %55 = vmatpush1.xpose.msra.mxu0 0.0
    %56 = vmatprep.subr.mxu0 0.0
    %57 = vmatpush1.xpose.msra.mxu0 0.0
    %58 = vmatprep.subr.mxu0 0.0
    %59 = vmatpush1.xpose.msra.mxu0 0.0
    %60 = vmatprep.subr.mxu0 0.0
    %61 = vmatpush1.xpose.msra.mxu0 0.0
    %62 = vmatprep.subr.mxu0 0.0
    %63 = vmatpush1.xpose.msra.mxu0 0.0
    %64 = vmatprep.subr.mxu0 0.0
    %65 = vmatpush1.xpose.msra.mxu0 0.0
    %66 = vmatprep.subr.mxu0 0.0
    %67 = vmatpush1.xpose.msra.mxu0 0.0
    %68 = vmatprep.subr.mxu0 0.0
    %69 = vmatpush1.xpose.msra.mxu0 0.0
    %70 = vmatprep.subr.mxu0 0.0
    %71 = vmatpush1.xpose.msra.mxu0 0.0
    %72 = vmatprep.subr.mxu0 0.0
    %73 = vmatpush1.xpose.msra.mxu0 0.0
    %74 = vmatprep.subr.mxu0 0.0
    %75 = vmatpush1.xpose.msra.mxu0 0.0
    %76 = vmatprep.subr.mxu0 0.0
    %77 = vmatpush1.xpose.msra.mxu0 0.0
    %78 = vmatprep.subr.mxu0 0.0
    %79 = vmatpush1.xpose.msra.mxu0 0.0
    %80 = vmatprep.subr.mxu0 0.0
    %81 = vmatpush1.xpose.msra.mxu0 0.0
    %82 = vmatprep.subr.mxu0 0.0
    %83 = vmatpush1.xpose.msra.mxu0 0.0
    %84 = vmatprep.subr.mxu0 0.0
    %85 = vmatpush1.xpose.msra.mxu0 0.0
    %86 = vmatprep.subr.mxu0 0.0
    %87 = vmatpush1.xpose.msra.mxu0 0.0
    %88 = vmatprep.subr.mxu0 0.0
    %89 = vmatpush1.xpose.msra.mxu0 0.0
    %90 = vmatprep.subr.mxu0 0.0
    %91 = vmatpush1.xpose.msra.mxu0 0.0
    %92 = vmatprep.subr.mxu0 0.0
    %93 = vmatpush1.xpose.msra.mxu0 0.0
    %94 = vmatprep.subr.mxu0 0.0
    %95 = vmatpush1.xpose.msra.mxu0 0.0
    %96 = vmatprep.subr.mxu0 0.0
    %97 = vmatpush1.xpose.msra.mxu0 0.0
    %98 = vmatprep.subr.mxu0 0.0
    %99 = vmatpush1.xpose.msra.mxu0 0.0
    %100 = vmatprep.subr.mxu0 0.0
    %101 = vmatpush1.xpose.msra.mxu0 0.0
    %102 = vmatprep.subr.mxu0 0.0
    %103 = vmatpush1.xpose.msra.mxu0 0.0
    %104 = vmatprep.subr.mxu0 0.0
    %105 = vmatpush1.xpose.msra.mxu0 0.0
    %106 = vmatprep.subr.mxu0 0.0
    %107 = vmatpush1.xpose.msra.mxu0 0.0
    %108 = vmatprep.subr.mxu0 0.0
    %109 = vmatpush1.xpose.msra.mxu0 0.0
    %110 = vmatprep.subr.mxu0 0.0
    %111 = vmatpush1.xpose.msra.mxu0 0.0
    %112 = vmatprep.mubr.f32.mxu0 0.0
    %113 = vmatmul.mubr.f32.gmra.mrb[0].mxu0 %v43
    %v114 = vpop.f32.mrb[0].mxu0
    %v115 = vadd.f32 %v40, %v114
    %v116 = vpop.f32.mrb[0].mxu0
    %117 = vdwg.mxu0
    %vm118 = vcmask 57344
    %119 = vst.msk [vmem:[#allocation6] sm:$0x1] %vm118, %v115
    // Predicated region
    $region18: #{tpu_custom_call.1} parent=1 // pred_check
      _
    $region19: #{tpu_custom_call.1} parent=1 // pred_check_branch
      %121 = sbr.rel (0) target = $region21
    $region20: #{tpu_custom_call.1} parent=1 // pred_region
      %s123 = ssub.s32 16, 16
      %124 = vsyncadd [#allocation5], %s123
      %s126 = sshll.u32 [#allocation6], 4
      %s127 = int_to_ptr.vmem [resolvable:$true] %s126
      %129 = dma.vmem_to_hbm [thread:$0]  %s127, 16, %s3, [#allocation5]
    $region21: #{tpu_custom_call.1} parent=1 // pred_fallthru
      _
    // Predicated region
    $region22: #{tpu_custom_call.1} parent=1 // pred_check
      _
    $region23: #{tpu_custom_call.1} parent=1 // pred_check_branch
      %131 = sbr.rel (0) target = $region25
    $region24: #{tpu_custom_call.1} parent=1 // pred_region
      %132 = dma.done [#allocation5], 16
    $region25: #{tpu_custom_call.1} parent=1 // pred_fallthru
      _
    %133 = vsyncpa [#allocation4], 1
    %134 = vsyncpa [#allocation5], 1

</llo_original>
